<compile_context>
chip_gen: v5e
topology: v5e:2x2
jax: 0.10.0
libtpu: 0.0.40
codegen_flags: <defaults>
</compile_context>

<pallas_src>
import functools

import jax
import jax.numpy as jnp
import numpy as np
from jax import lax
from jax.experimental import pallas as pl
from jax.experimental.pallas import tpu as pltpu


def _fam_kernel(x1_ref, x2_ref, w_ref, b_ref, mask_ref, out_ref, *, W, C):
    """One batch element per grid step.

    x1_ref   : (1, C, HW)   residual + first factor
    x2_ref   : (1, C, HW)   second factor
    w_ref    : (C, 9*C)     conv weights, columns ordered ((kh*3+kw)*C + ci)
    b_ref    : (C, 1)       conv bias
    mask_ref : (9, HW)      0/1 tap-validity mask (zero padding at borders)
    out_ref  : (1, C, HW)
    """
    HW = out_ref.shape[-1]

    x1 = x1_ref[0]                           # (C, HW)
    prod = x1 * x2_ref[0]                    # (C, HW)  conv input = x1 * x2
    mask = mask_ref[...]                     # (9, HW)  0/1 f32

    # Build the im2col patch matrix in vregs.  For tap (dh, dw), column f of
    # that tap's rows must hold prod[:, f + dh*W + dw], i.e. a cyclic lane
    # roll of prod by -(dh*W + dw).  Every lane where the roll wraps (or
    # bleeds across an image row) is an out-of-image tap and is zeroed by the
    # multiplicative border mask.
    taps = []
    idx = 0
    for dh in (-1, 0, 1):
        for dw in (-1, 0, 1):
            shift = dh * W + dw              # static, |shift| <= W + 1
            if shift == 0:
                rolled = prod
            else:
                rolled = pltpu.roll(prod, shift=(-shift) % HW, axis=1)
            taps.append(rolled * mask[idx:idx + 1, :])       # (C, HW)
            idx += 1
    patches = jnp.concatenate(taps, axis=0)                  # (9*C, HW)

    # Single im2col matmul on the MXU: (C, 9C) @ (9C, HW) -> (C, HW).
    y = jnp.dot(w_ref[...], patches, preferred_element_type=jnp.float32)

    # bias + residual add; lane-dense (HW-last) unmasked store.
    out_ref[0] = (y + b_ref[...] + x1).astype(out_ref.dtype)


def fam_pallas(x1_nchw, x2_nchw, w_oihw, b):
    """FAM forward: x1 + conv3x3(x1 * x2) + bias.  NCHW in / NCHW out."""
    N, C, H, W = x1_nchw.shape
    assert x2_nchw.shape == (N, C, H, W)
    assert w_oihw.shape == (C, C, 3, 3)
    HW = H * W
    # Invariant for the cyclic-roll construction: a 3x3 tap shift never spans
    # the full flattened image, so every wrapped lane is mask-zeroed.
    assert W + 1 < HW

    # NCHW -> (N, C, H*W): pure reshape, no transpose (free in the wrapper).
    x1 = x1_nchw.reshape(N, C, HW).astype(jnp.float32)
    x2 = x2_nchw.reshape(N, C, HW).astype(jnp.float32)

    # (Cout, Cin, 3, 3) -> (Cout, 3, 3, Cin) -> (Cout, 9*Cin); column index is
    # ((kh*3 + kw) * Cin + ci), matching the kernel's patch-row ordering.
    w_mat = jnp.transpose(w_oihw, (0, 2, 3, 1)).reshape(C, 9 * C)
    w_mat = w_mat.astype(jnp.float32)
    b_col = b.reshape(C, 1).astype(jnp.float32)

    # Constant 0/1 tap-validity mask, (9, HW): zero wherever the 3x3 tap would
    # read outside the image (exactly the lanes where the in-kernel cyclic
    # roll wraps or bleeds across a row).  Precomputed host-side with numpy.
    f = np.arange(HW)
    hh, ww = f // W, f % W
    rows = []
    for dh in (-1, 0, 1):
        for dw in (-1, 0, 1):
            rows.append(((hh + dh >= 0) & (hh + dh < H) &
                         (ww + dw >= 0) & (ww + dw < W)).astype(np.float32))
    mask = jnp.asarray(np.stack(rows, axis=0))               # (9, HW)

    kernel = functools.partial(_fam_kernel, W=W, C=C)

    flops = N * (2 * 9 * C * C * HW + 12 * C * HW)
    bytes_accessed = 4 * (3 * N * C * HW + 9 * C * C + C + 9 * HW)

    out = pl.pallas_call(
        kernel,
        out_shape=jax.ShapeDtypeStruct((N, C, HW), jnp.float32),
        grid_spec=pl.GridSpec(
            grid=(N,),
            in_specs=[
                pl.BlockSpec((1, C, HW), lambda n: (n, 0, 0)),   # x1
                pl.BlockSpec((1, C, HW), lambda n: (n, 0, 0)),   # x2
                pl.BlockSpec((C, 9 * C), lambda n: (0, 0)),      # weights
                pl.BlockSpec((C, 1), lambda n: (0, 0)),          # bias
                pl.BlockSpec((9, HW), lambda n: (0, 0)),         # tap mask
            ],
            out_specs=pl.BlockSpec((1, C, HW), lambda n: (n, 0, 0)),
        ),
        compiler_params=pltpu.CompilerParams(
            dimension_semantics=("parallel",),
        ),
        cost_estimate=pl.CostEstimate(
            flops=flops, transcendentals=0, bytes_accessed=bytes_accessed),
    )(x1, x2, w_mat, b_col, mask)

    return out.reshape(N, C, H, W)


def _reference(x1, x2, w, b):
    """Pure-JAX reference matching the PyTorch FAM forward."""
    x = x1 * x2
    y = lax.conv_general_dilated(
        x, w, window_strides=(1, 1), padding=((1, 1), (1, 1)),
        dimension_numbers=("NCHW", "OIHW", "NCHW"))
    return x1 + y + b.reshape(1, -1, 1, 1)


if __name__ == "__main__":
    key = jax.random.PRNGKey(0)
    N, C, H, W = 2, 4, 16, 16

    k0, k1, k2, k3 = jax.random.split(key, 4)
    x1 = jax.random.normal(k0, (N, C, H, W), dtype=jnp.float32)
    x2 = jax.random.normal(k1, (N, C, H, W), dtype=jnp.float32)

    # PyTorch Conv2d-like init (kaiming-uniform bound ~ 1/sqrt(fan_in)).
    fan_in = C * 3 * 3
    bound = 1.0 / np.sqrt(fan_in)
    w = jax.random.uniform(k2, (C, C, 3, 3), jnp.float32, -bound, bound)
    b = jax.random.uniform(k3, (C,), jnp.float32, -bound, bound)

    out = fam_pallas(x1, x2, w, b)
    out = jax.block_until_ready(out)

    ref = _reference(x1, x2, w, b)
    assert out.shape == (N, C, H, W)
    assert jnp.allclose(out, ref, atol=1e-4, rtol=1e-4)

    print("KERNEL_OK")
</pallas_src>

<mosaic_0001>
module attributes {stable_mosaic.version = 11 : i64} {
  func.func @_fam_kernel(%arg0: i32, %arg1: memref<1x4x256xf32, #tpu.memory_space<vmem>>, %arg2: memref<1x4x256xf32, #tpu.memory_space<vmem>>, %arg3: memref<4x36xf32, #tpu.memory_space<vmem>>, %arg4: memref<4x1xf32, #tpu.memory_space<vmem>>, %arg5: memref<9x256xf32, #tpu.memory_space<vmem>>, %arg6: memref<1x4x256xf32, #tpu.memory_space<vmem>>) attributes {dimension_semantics = [#tpu.dimension_semantics<parallel>], iteration_bounds = array<i64: 2>, scalar_prefetch = 0 : i64, scratch_operands = 0 : i64, tpu.core_type = #tpu.core_type<tc>, window_params = [{transform_indices = @transform_0, window_bounds = array<i64: 1, 4, 256>}, {transform_indices = @transform_1, window_bounds = array<i64: 1, 4, 256>}, {pipeline_mode = #tpu.pipeline_mode<synchronous>, transform_indices = @transform_2, window_bounds = array<i64: 4, 36>}, {pipeline_mode = #tpu.pipeline_mode<synchronous>, transform_indices = @transform_3, window_bounds = array<i64: 4, 1>}, {pipeline_mode = #tpu.pipeline_mode<synchronous>, transform_indices = @transform_4, window_bounds = array<i64: 9, 256>}, {transform_indices = @transform_5, window_bounds = array<i64: 1, 4, 256>}]} {
    %c0 = arith.constant 0 : index
    %c0_0 = arith.constant 0 : index
    %c0_1 = arith.constant 0 : index
    %0 = vector.load %arg1[%c0, %c0_0, %c0_1] : memref<1x4x256xf32, #tpu.memory_space<vmem>>, vector<1x4x256xf32>
    %1 = vector.shape_cast %0 : vector<1x4x256xf32> to vector<4x256xf32>
    %c0_2 = arith.constant 0 : index
    %c0_3 = arith.constant 0 : index
    %c0_4 = arith.constant 0 : index
    %2 = vector.load %arg2[%c0_2, %c0_3, %c0_4] : memref<1x4x256xf32, #tpu.memory_space<vmem>>, vector<1x4x256xf32>
    %3 = vector.shape_cast %2 : vector<1x4x256xf32> to vector<4x256xf32>
    %4 = arith.mulf %1, %3 : vector<4x256xf32>
    %c0_5 = arith.constant 0 : index
    %c0_6 = arith.constant 0 : index
    %5 = vector.load %arg5[%c0_5, %c0_6] : memref<9x256xf32, #tpu.memory_space<vmem>>, vector<9x256xf32>
    %c17_i32 = arith.constant 17 : i32
    %6 = tpu.dynamic_rotate %4 by %c17_i32 dim 1 : vector<4x256xf32>, i32 -> vector<4x256xf32>
    %7 = vector.extract_strided_slice %5 {offsets = [0, 0], sizes = [1, 256], strides = [1, 1]} : vector<9x256xf32> to vector<1x256xf32>
    %8 = vector.broadcast %7 : vector<1x256xf32> to vector<4x256xf32>
    %9 = arith.mulf %6, %8 : vector<4x256xf32>
    %c16_i32 = arith.constant 16 : i32
    %10 = tpu.dynamic_rotate %4 by %c16_i32 dim 1 : vector<4x256xf32>, i32 -> vector<4x256xf32>
    %11 = vector.extract_strided_slice %5 {offsets = [1, 0], sizes = [1, 256], strides = [1, 1]} : vector<9x256xf32> to vector<1x256xf32>
    %12 = vector.broadcast %11 : vector<1x256xf32> to vector<4x256xf32>
    %13 = arith.mulf %10, %12 : vector<4x256xf32>
    %c15_i32 = arith.constant 15 : i32
    %14 = tpu.dynamic_rotate %4 by %c15_i32 dim 1 : vector<4x256xf32>, i32 -> vector<4x256xf32>
    %15 = vector.extract_strided_slice %5 {offsets = [2, 0], sizes = [1, 256], strides = [1, 1]} : vector<9x256xf32> to vector<1x256xf32>
    %16 = vector.broadcast %15 : vector<1x256xf32> to vector<4x256xf32>
    %17 = arith.mulf %14, %16 : vector<4x256xf32>
    %c1_i32 = arith.constant 1 : i32
    %18 = tpu.dynamic_rotate %4 by %c1_i32 dim 1 : vector<4x256xf32>, i32 -> vector<4x256xf32>
    %19 = vector.extract_strided_slice %5 {offsets = [3, 0], sizes = [1, 256], strides = [1, 1]} : vector<9x256xf32> to vector<1x256xf32>
    %20 = vector.broadcast %19 : vector<1x256xf32> to vector<4x256xf32>
    %21 = arith.mulf %18, %20 : vector<4x256xf32>
    %22 = vector.extract_strided_slice %5 {offsets = [4, 0], sizes = [1, 256], strides = [1, 1]} : vector<9x256xf32> to vector<1x256xf32>
    %23 = vector.broadcast %22 : vector<1x256xf32> to vector<4x256xf32>
    %24 = arith.mulf %4, %23 : vector<4x256xf32>
    %c255_i32 = arith.constant 255 : i32
    %25 = tpu.dynamic_rotate %4 by %c255_i32 dim 1 : vector<4x256xf32>, i32 -> vector<4x256xf32>
    %26 = vector.extract_strided_slice %5 {offsets = [5, 0], sizes = [1, 256], strides = [1, 1]} : vector<9x256xf32> to vector<1x256xf32>
    %27 = vector.broadcast %26 : vector<1x256xf32> to vector<4x256xf32>
    %28 = arith.mulf %25, %27 : vector<4x256xf32>
    %c241_i32 = arith.constant 241 : i32
    %29 = tpu.dynamic_rotate %4 by %c241_i32 dim 1 : vector<4x256xf32>, i32 -> vector<4x256xf32>
    %30 = vector.extract_strided_slice %5 {offsets = [6, 0], sizes = [1, 256], strides = [1, 1]} : vector<9x256xf32> to vector<1x256xf32>
    %31 = vector.broadcast %30 : vector<1x256xf32> to vector<4x256xf32>
    %32 = arith.mulf %29, %31 : vector<4x256xf32>
    %c240_i32 = arith.constant 240 : i32
    %33 = tpu.dynamic_rotate %4 by %c240_i32 dim 1 : vector<4x256xf32>, i32 -> vector<4x256xf32>
    %34 = vector.extract_strided_slice %5 {offsets = [7, 0], sizes = [1, 256], strides = [1, 1]} : vector<9x256xf32> to vector<1x256xf32>
    %35 = vector.broadcast %34 : vector<1x256xf32> to vector<4x256xf32>
    %36 = arith.mulf %33, %35 : vector<4x256xf32>
    %c239_i32 = arith.constant 239 : i32
    %37 = tpu.dynamic_rotate %4 by %c239_i32 dim 1 : vector<4x256xf32>, i32 -> vector<4x256xf32>
    %38 = vector.extract_strided_slice %5 {offsets = [8, 0], sizes = [1, 256], strides = [1, 1]} : vector<9x256xf32> to vector<1x256xf32>
    %39 = vector.broadcast %38 : vector<1x256xf32> to vector<4x256xf32>
    %40 = arith.mulf %37, %39 : vector<4x256xf32>
    %41 = tpu.concatenate %9, %13, %17, %21, %24, %28, %32, %36, %40 in 0 : vector<4x256xf32>, vector<4x256xf32>, vector<4x256xf32>, vector<4x256xf32>, vector<4x256xf32>, vector<4x256xf32>, vector<4x256xf32>, vector<4x256xf32>, vector<4x256xf32> -> vector<36x256xf32>
    %c0_7 = arith.constant 0 : index
    %c0_8 = arith.constant 0 : index
    %42 = vector.load %arg3[%c0_7, %c0_8] : memref<4x36xf32, #tpu.memory_space<vmem>>, vector<4x36xf32>
    %cst = arith.constant dense<0.000000e+00> : vector<4x256xf32>
    %43 = tpu.matmul %42, %41, %cst {dimension_numbers = #tpu.dot_dimension_numbers<[1], [0], [0], [1], [0, 0, 1, 1], [], []>} : vector<4x36xf32>, vector<36x256xf32>, vector<4x256xf32> -> vector<4x256xf32>
    %c0_9 = arith.constant 0 : index
    %c0_10 = arith.constant 0 : index
    %44 = vector.load %arg4[%c0_9, %c0_10] : memref<4x1xf32, #tpu.memory_space<vmem>>, vector<4x1xf32>
    %45 = vector.broadcast %44 : vector<4x1xf32> to vector<4x256xf32>
    %46 = arith.addf %43, %45 : vector<4x256xf32>
    %47 = arith.addf %46, %1 : vector<4x256xf32>
    %c0_11 = arith.constant 0 : index
    %c0_12 = arith.constant 0 : index
    %c0_13 = arith.constant 0 : index
    %48 = vector.load %arg6[%c0_11, %c0_12, %c0_13] : memref<1x4x256xf32, #tpu.memory_space<vmem>>, vector<1x4x256xf32>
    %49 = vector.shape_cast %48 : vector<1x4x256xf32> to vector<4x256xf32>
    %50 = vector.shape_cast %47 : vector<4x256xf32> to vector<1x4x256xf32>
    tpu.vector_store %arg6[%c0_11, %c0_12, %c0_13], %50 {strides = array<i32>} : memref<1x4x256xf32, #tpu.memory_space<vmem>>, vector<1x4x256xf32>,
    return
  }
  func.func @transform_0(%arg0: i32) -> (i32, i32, i32) {
    %c0_i32 = arith.constant 0 : i32
    %c0_i32_0 = arith.constant 0 : i32
    %c0_i32_1 = arith.constant 0 : i32
    return %arg0, %c0_i32, %c0_i32_0 : i32, i32, i32
  }
  func.func @transform_1(%arg0: i32) -> (i32, i32, i32) {
    %c0_i32 = arith.constant 0 : i32
    %c0_i32_0 = arith.constant 0 : i32
    %c0_i32_1 = arith.constant 0 : i32
    return %arg0, %c0_i32, %c0_i32_0 : i32, i32, i32
  }
  func.func @transform_2(%arg0: i32) -> (i32, i32) {
    %c0_i32 = arith.constant 0 : i32
    %c0_i32_0 = arith.constant 0 : i32
    %c0_i32_1 = arith.constant 0 : i32
    return %c0_i32, %c0_i32_0 : i32, i32
  }
  func.func @transform_3(%arg0: i32) -> (i32, i32) {
    %c0_i32 = arith.constant 0 : i32
    %c0_i32_0 = arith.constant 0 : i32
    %c0_i32_1 = arith.constant 0 : i32
    return %c0_i32, %c0_i32_0 : i32, i32
  }
  func.func @transform_4(%arg0: i32) -> (i32, i32) {
    %c0_i32 = arith.constant 0 : i32
    %c0_i32_0 = arith.constant 0 : i32
    %c0_i32_1 = arith.constant 0 : i32
    return %c0_i32, %c0_i32_0 : i32, i32
  }
  func.func @transform_5(%arg0: i32) -> (i32, i32, i32) {
    %c0_i32 = arith.constant 0 : i32
    %c0_i32_0 = arith.constant 0 : i32
    %c0_i32_1 = arith.constant 0 : i32
    return %arg0, %c0_i32, %c0_i32_0 : i32, i32, i32
  }
}

</mosaic_0001>

<llo_original>
// kernel: tpu_custom_call.1
$region0: #{tpu_custom_call.1}
  #allocation0 [shape = 'u32[]', space=smem, size = 0x4, offset = 0x4, fixed_abs, tag = 'smem constant byte address 0x4 - core index']
  #allocation1 [shape = 'u32[72,128]{1,0:T(1,128)}', space=vmem, size = 0x9000, scoped, tag = 'internal scratch']
  %s0 = inlined_call_operand.hbm [shape: f32[2,4,256], index: 0, kind: input, shape index: {}]
  %s1 = inlined_call_operand.hbm [shape: f32[2,4,256], index: 1, kind: input, shape index: {}]
  %s2 = inlined_call_operand.vmem [shape: f32[4,36], index: 2, kind: input, shape index: {}]
  %s3 = inlined_call_operand.vmem [shape: f32[4,1], index: 3, kind: input, shape index: {}]
  %s4 = inlined_call_operand.hbm [shape: f32[9,256], index: 4, kind: input, shape index: {}]
  %s5 = inlined_call_operand.hbm [shape: f32[2,4,256], index: 5, kind: output, shape index: {}]
  %s6 = sld [smem:[#allocation0]]
  $region65: #{tpu_custom_call.1} parent=0
    _
  %s8 = ssub.s32 1, %s6
  %s9 = scalar_select 0, %s8, %s6
  $region1: #{tpu_custom_call.1} parent=0
    #allocation2 [shape = 'u8[8192]{0}', space=vmem, size = 0x2000, scoped, tag = 'input window, operand 0']
    #allocation3 [shape = 's32[2]{0}', space=sflag, size = 0x8, scoped, tag = 'scoped memory for tpu_custom_call.1']
    #allocation4 [shape = 's32[2]{0}', space=sflag, size = 0x8, scoped, tag = 'scoped memory for tpu_custom_call.1']
    #allocation5 [shape = 'u8[8192]{0}', space=vmem, size = 0x2000, scoped, tag = 'input window, operand 1']
    #allocation6 [shape = 's32[2]{0}', space=sflag, size = 0x8, scoped, tag = 'scoped memory for tpu_custom_call.1']
    #allocation7 [shape = 'u8[16384]{0}', space=vmem, size = 0x4000, scoped, tag = 'input window, operand 4, single buffered']
    #allocation8 [shape = 'u8[8192]{0}', space=vmem, size = 0x2000, scoped, tag = 'output window, operand 0']
    %10 = vsyncpa [#allocation3], 0
    %s11 = scalar_lea.sflag [#allocation3], 1
    %12 = vsyncpa %s11, 0
    %13 = vsyncpa [#allocation6], 0
    %s14 = scalar_lea.sflag [#allocation6], 1
    %15 = vsyncpa %s14, 0
    %16 = vsyncpa [#allocation4], 0
    %s17 = scalar_lea.sflag [#allocation4], 1
    %18 = vsyncpa %s17, 0
    loop: start=0, step=1, limit=4
    $region2: #{tpu_custom_call.1} parent=1 // loop_pre_header
      _
    $region3: #{tpu_custom_call.1} parent=1 // loop_header
      %s20 = sphi 0, %s24
      %p21 = scmp.ge.s32.totalorder %s20, 4
      %s30 = sphi 0, %s32
      %s33 = sphi 0, %s30
      %s34 = sphi 0, %s33
      %s50 = sphi 0, %s34
      %s56 = sphi 0, %s58
      %s59 = sphi 0, %s56
      %s60 = sphi 0, %s59
      %s76 = sphi 0, %s60
      %s80 = sphi 0, %s80
      %s82 = sphi 0, %s80
      %s83 = sphi 0, %s82
      %s97 = sphi 0, %s83
      %s101 = sphi 0, %s101
      %s103 = sphi 0, %s101
      %s104 = sphi 0, %s103
      %s118 = sphi 0, %s104
      %s122 = sphi 0, %s122
      %s124 = sphi 0, %s122
      %s125 = sphi 0, %s124
      %s139 = sphi 0, %s125
      %s145 = sphi 0, %s147
      %s148 = sphi 0, %s145
      %s149 = sphi 0, %s148
      %s165 = sphi 0, %s149
    $region4: #{tpu_custom_call.1} parent=1 // loop_header_branch
      %23 = sbr.rel (%p21) target = $region8
    $region5: #{tpu_custom_call.1} parent=1 // loop_body
      %s25 = ssub.s32 %s20, 1
      %s26 = ssub.s32 %s20, 2
      %s27 = sadd.s32 %s20, 1
      %s28 = ssub.s32 %s20, %s27
      %p29 = scmp.eq.s32.totalorder %s28, 0
      %s31 = sadd.s32 %s30, 1
      %s32 = scalar_select %p29, %s30, %s31
      %p35 = pneg %p29
      %p36 = scmp.eq.s32.totalorder %s20, 1
      %p37 = por %p35, %p36
      %p38 = scmp.ne.s32.totalorder %s30, %s33
      %p39 = scmp.eq.s32.totalorder %s20, 0
      %p40 = por %p38, %p39
      %p41 = scmp.ne.s32.totalorder %s30, %s33
      %p42 = scmp.eq.s32.totalorder %s25, 1
      %p43 = por %p41, %p42
      %p44 = scmp.ne.s32.totalorder %s33, %s34
      %p45 = scmp.eq.s32.totalorder %s25, 0
      %p46 = por %p44, %p45
      %p47 = scmp.ne.s32.totalorder %s33, %s34
      %p48 = scmp.eq.s32.totalorder %s26, 1
      %p49 = por %p47, %p48
      %p51 = scmp.ne.s32.totalorder %s34, %s50
      %p52 = scmp.eq.s32.totalorder %s26, 0
      %p53 = por %p51, %p52
      %s54 = ssub.s32 %s20, %s27
      %p55 = scmp.eq.s32.totalorder %s54, 0
      %s57 = sadd.s32 %s56, 1
      %s58 = scalar_select %p55, %s56, %s57
      %p61 = pneg %p55
      %p62 = scmp.eq.s32.totalorder %s20, 1
      %p63 = por %p61, %p62
      %p64 = scmp.ne.s32.totalorder %s56, %s59
      %p65 = scmp.eq.s32.totalorder %s20, 0
      %p66 = por %p64, %p65
      %p67 = scmp.ne.s32.totalorder %s56, %s59
      %p68 = scmp.eq.s32.totalorder %s25, 1
      %p69 = por %p67, %p68
      %p70 = scmp.ne.s32.totalorder %s59, %s60
      %p71 = scmp.eq.s32.totalorder %s25, 0
      %p72 = por %p70, %p71
      %p73 = scmp.ne.s32.totalorder %s59, %s60
      %p74 = scmp.eq.s32.totalorder %s26, 1
      %p75 = por %p73, %p74
      %p77 = scmp.ne.s32.totalorder %s60, %s76
      %p78 = scmp.eq.s32.totalorder %s26, 0
      %p79 = por %p77, %p78
      %s81 = sadd.s32 %s80, 1
      %p84 = scmp.eq.s32.totalorder %s20, 1
      %p85 = scmp.ne.s32.totalorder %s80, %s82
      %p86 = scmp.eq.s32.totalorder %s20, 0
      %p87 = por %p85, %p86
      %p88 = scmp.ne.s32.totalorder %s80, %s82
      %p89 = scmp.eq.s32.totalorder %s25, 1
      %p90 = por %p88, %p89
      %p91 = scmp.ne.s32.totalorder %s82, %s83
      %p92 = scmp.eq.s32.totalorder %s25, 0
      %p93 = por %p91, %p92
      %p94 = scmp.ne.s32.totalorder %s82, %s83
      %p95 = scmp.eq.s32.totalorder %s26, 1
      %p96 = por %p94, %p95
      %p98 = scmp.ne.s32.totalorder %s83, %s97
      %p99 = scmp.eq.s32.totalorder %s26, 0
      %p100 = por %p98, %p99
      %s102 = sadd.s32 %s101, 1
      %p105 = scmp.eq.s32.totalorder %s20, 1
      %p106 = scmp.ne.s32.totalorder %s101, %s103
      %p107 = scmp.eq.s32.totalorder %s20, 0
      %p108 = por %p106, %p107
      %p109 = scmp.ne.s32.totalorder %s101, %s103
      %p110 = scmp.eq.s32.totalorder %s25, 1
      %p111 = por %p109, %p110
      %p112 = scmp.ne.s32.totalorder %s103, %s104
      %p113 = scmp.eq.s32.totalorder %s25, 0
      %p114 = por %p112, %p113
      %p115 = scmp.ne.s32.totalorder %s103, %s104
      %p116 = scmp.eq.s32.totalorder %s26, 1
      %p117 = por %p115, %p116
      %p119 = scmp.ne.s32.totalorder %s104, %s118
      %p120 = scmp.eq.s32.totalorder %s26, 0
      %p121 = por %p119, %p120
      %s123 = sadd.s32 %s122, 1
      %p126 = scmp.eq.s32.totalorder %s20, 1
      %p127 = scmp.ne.s32.totalorder %s122, %s124
      %p128 = scmp.eq.s32.totalorder %s20, 0
      %p129 = por %p127, %p128
      %p130 = scmp.ne.s32.totalorder %s122, %s124
      %p131 = scmp.eq.s32.totalorder %s25, 1
      %p132 = por %p130, %p131
      %p133 = scmp.ne.s32.totalorder %s124, %s125
      %p134 = scmp.eq.s32.totalorder %s25, 0
      %p135 = por %p133, %p134
      %p136 = scmp.ne.s32.totalorder %s124, %s125
      %p137 = scmp.eq.s32.totalorder %s26, 1
      %p138 = por %p136, %p137
      %p140 = scmp.ne.s32.totalorder %s125, %s139
      %p141 = scmp.eq.s32.totalorder %s26, 0
      %p142 = por %p140, %p141
      %s143 = ssub.s32 %s20, %s27
      %p144 = scmp.eq.s32.totalorder %s143, 0
      %s146 = sadd.s32 %s145, 1
      %s147 = scalar_select %p144, %s145, %s146
      %p150 = pneg %p144
      %p151 = scmp.eq.s32.totalorder %s20, 1
      %p152 = por %p150, %p151
      %p153 = scmp.ne.s32.totalorder %s145, %s148
      %p154 = scmp.eq.s32.totalorder %s20, 0
      %p155 = por %p153, %p154
      %p156 = scmp.ne.s32.totalorder %s145, %s148
      %p157 = scmp.eq.s32.totalorder %s25, 1
      %p158 = por %p156, %p157
      %p159 = scmp.ne.s32.totalorder %s148, %s149
      %p160 = scmp.eq.s32.totalorder %s25, 0
      %p161 = por %p159, %p160
      %p162 = scmp.ne.s32.totalorder %s148, %s149
      %p163 = scmp.eq.s32.totalorder %s26, 1
      %p164 = por %p162, %p163
      %p166 = scmp.ne.s32.totalorder %s149, %s165
      %p167 = scmp.eq.s32.totalorder %s26, 0
      %p168 = por %p166, %p167
      %p169 = scmp.le.s32.totalorder 1, %s20
      %p170 = scmp.lt.s32.totalorder %s20, 3
      %p171 = pnand %p169, %p170
      %p172 = pneg %p171
      // Predicated region
      $region9: #{tpu_custom_call.1} parent=5 // pred_check
        _
      $region10: #{tpu_custom_call.1} parent=5 // pred_check_branch
        %174 = sbr.rel (%p171) target = $region12
      $region11: #{tpu_custom_call.1} parent=5 // pred_region
        %s175 = ssub.s32 %s20, 1
        // Predicated region
        $region13: #{tpu_custom_call.1} parent=11 // pred_check
          %p176 = pneg %p93
        $region14: #{tpu_custom_call.1} parent=11 // pred_check_branch
          %178 = sbr.rel (%p176) target = $region16
        $region15: #{tpu_custom_call.1} parent=11 // pred_region
          _
        $region16: #{tpu_custom_call.1} parent=11 // pred_fallthru
          _
        // Predicated region
        $region17: #{tpu_custom_call.1} parent=11 // pred_check
          %p179 = pneg %p114
        $region18: #{tpu_custom_call.1} parent=11 // pred_check_branch
          %181 = sbr.rel (%p179) target = $region20
        $region19: #{tpu_custom_call.1} parent=11 // pred_region
          _
        $region20: #{tpu_custom_call.1} parent=11 // pred_fallthru
          _
        // Predicated region
        $region21: #{tpu_custom_call.1} parent=11 // pred_check
          %p182 = pneg %p135
        $region22: #{tpu_custom_call.1} parent=11 // pred_check_branch
          %184 = sbr.rel (%p182) target = $region24
        $region23: #{tpu_custom_call.1} parent=11 // pred_region
          %186 = vsyncadd [#allocation6], 0
          %s187 = sshll.u32 %s4, 4
          %s188 = int_to_ptr.hbm [resolvable:$true] %s187
          %s189 = sshll.u32 [#allocation7], 4
          %s190 = int_to_ptr.vmem [resolvable:$true] %s189
          %195 = dma.hbm_to_vmem [thread:$0]  %s188, 512, %s190, [#allocation6], 256, 256, 16
        $region24: #{tpu_custom_call.1} parent=11 // pred_fallthru
          _
      $region12: #{tpu_custom_call.1} parent=5 // pred_fallthru
        _
      %p196 = scmp.lt.s32.totalorder %s20, 2
      // Predicated region
      $region25: #{tpu_custom_call.1} parent=5 // pred_check
        %p197 = pneg %p196
      $region26: #{tpu_custom_call.1} parent=5 // pred_check_branch
        %199 = sbr.rel (%p197) target = $region28
      $region27: #{tpu_custom_call.1} parent=5 // pred_region
        // Predicated region
        $region29: #{tpu_custom_call.1} parent=27 // pred_check
          %p200 = pneg %p40
        $region30: #{tpu_custom_call.1} parent=27 // pred_check_branch
          %202 = sbr.rel (%p200) target = $region32
        $region31: #{tpu_custom_call.1} parent=27 // pred_region
          %s203 = sand.u32 %s30, 1
          %s204 = scalar_lea.sflag [#allocation3], %s203
          %s205 = sand.u32 %s30, 1
          %s206 = smul.addr %s205, 8
          %s207 = scalar_lea.vmem [#allocation2], %s206
          %209 = vsyncadd %s204, 0
          %s210 = smul.addr %s20, 2
          %s211 = smul.addr %s210, 4
          %s212 = scalar_lea.hbm %s0, %s211
          %s214 = sshll.u32 %s212, 4
          %s215 = int_to_ptr.hbm [resolvable:$true] %s214
          %s216 = sshll.u32 %s207, 4
          %s217 = int_to_ptr.vmem [resolvable:$true] %s216
          %219 = dma.hbm_to_vmem [thread:$0]  %s215, 128, %s217, %s204
        $region32: #{tpu_custom_call.1} parent=27 // pred_fallthru
          _
        // Predicated region
        $region33: #{tpu_custom_call.1} parent=27 // pred_check
          %p220 = pneg %p66
        $region34: #{tpu_custom_call.1} parent=27 // pred_check_branch
          %222 = sbr.rel (%p220) target = $region36
        $region35: #{tpu_custom_call.1} parent=27 // pred_region
          %s223 = sand.u32 %s20, 1
          %s224 = scalar_lea.sflag [#allocation6], %s223
          %s225 = sand.u32 %s56, 1
          %s226 = smul.addr %s225, 8
          %s227 = scalar_lea.vmem [#allocation5], %s226
          %229 = vsyncadd %s224, 0
          %s230 = smul.addr %s20, 2
          %s231 = smul.addr %s230, 4
          %s232 = scalar_lea.hbm %s1, %s231
          %s234 = sshll.u32 %s232, 4
          %s235 = int_to_ptr.hbm [resolvable:$true] %s234
          %s236 = sshll.u32 %s227, 4
          %s237 = int_to_ptr.vmem [resolvable:$true] %s236
          %239 = dma.hbm_to_vmem [thread:$0]  %s235, 128, %s237, %s224
        $region36: #{tpu_custom_call.1} parent=27 // pred_fallthru
          _
      $region28: #{tpu_custom_call.1} parent=5 // pred_fallthru
        _
      %p240 = scmp.le.s32.totalorder 1, %s20
      %p241 = scmp.lt.s32.totalorder %s20, 3
      %p242 = pnand %p240, %p241
      %p243 = pneg %p242
      // Predicated region
      $region37: #{tpu_custom_call.1} parent=5 // pred_check
        _
      $region38: #{tpu_custom_call.1} parent=5 // pred_check_branch
        %245 = sbr.rel (%p242) target = $region40
      $region39: #{tpu_custom_call.1} parent=5 // pred_region
        %s246 = ssub.s32 %s20, 1
        %s247 = sand.u32 %s33, 1
        %s248 = scalar_lea.sflag [#allocation3], %s247
        %s249 = sand.u32 %s33, 1
        %s250 = smul.addr %s249, 8
        %s251 = scalar_lea.vmem [#allocation2], %s250
        // Predicated region
        $region41: #{tpu_custom_call.1} parent=39 // pred_check
          %p252 = pneg %p46
        $region42: #{tpu_custom_call.1} parent=39 // pred_check_branch
          %254 = sbr.rel (%p252) target = $region44
        $region43: #{tpu_custom_call.1} parent=39 // pred_region
          %256 = dma.done %s248, 128
        $region44: #{tpu_custom_call.1} parent=39 // pred_fallthru
          _
        %s257 = sand.u32 %s25, 1
        %s258 = scalar_lea.sflag [#allocation6], %s257
        %s259 = sand.u32 %s59, 1
        %s260 = smul.addr %s259, 8
        %s261 = scalar_lea.vmem [#allocation5], %s260
        // Predicated region
        $region45: #{tpu_custom_call.1} parent=39 // pred_check
          %p262 = pneg %p72
        $region46: #{tpu_custom_call.1} parent=39 // pred_check_branch
          %264 = sbr.rel (%p262) target = $region48
        $region47: #{tpu_custom_call.1} parent=39 // pred_region
          %266 = dma.done %s258, 128
        $region48: #{tpu_custom_call.1} parent=39 // pred_fallthru
          _
        // Predicated region
        $region49: #{tpu_custom_call.1} parent=39 // pred_check
          %p267 = pneg %p135
        $region50: #{tpu_custom_call.1} parent=39 // pred_check_branch
          %269 = sbr.rel (%p267) target = $region52
        $region51: #{tpu_custom_call.1} parent=39 // pred_region
          %271 = dma.done [#allocation6], 512
        $region52: #{tpu_custom_call.1} parent=39 // pred_fallthru
          _
        %s272 = sand.u32 %s33, 1
        %s273 = scalar_lea.sflag [#allocation3], %s272
        %s274 = sand.u32 %s33, 1
        %s275 = smul.addr %s274, 8
        %s276 = scalar_lea.vmem [#allocation2], %s275
        %p277 = pneg %p46
        %p278 = pneg %p43
        %s279 = sand.u32 %s25, 1
        %s280 = scalar_lea.sflag [#allocation6], %s279
        %s281 = sand.u32 %s59, 1
        %s282 = smul.addr %s281, 8
        %s283 = scalar_lea.vmem [#allocation5], %s282
        %p284 = pneg %p72
        %p285 = pneg %p69
        %p286 = pneg %p93
        %p287 = pneg %p90
        %p288 = pneg %p114
        %p289 = pneg %p111
        %p290 = pneg %p135
        %p291 = pneg %p132
        %p292 = pneg %p161
        %p293 = pneg %p158
        %s294 = sand.u32 %s148, 1
        %s295 = scalar_lea.sflag [#allocation4], %s294
        %s296 = sand.u32 %s148, 1
        %s297 = smul.addr %s296, 8
        %s298 = scalar_lea.vmem [#allocation8], %s297
        %v299 = vld [vmem:[%s251] sm:$0xff]
        %v300 = vld [vmem:[%s261] sm:$0xff]
        %v301 = vmul.f32 %v299, %v300
        %v302 = vld [vmem:[#allocation7] sm:$0xff]
        %v303 = vld [vmem:[#allocation7 + $0x8] sm:$0xff]
        %v304 = vld [vmem:[#allocation7 + $0x10] sm:$0x1]
        %v305 = vld [vmem:[#allocation7 + $0x18] sm:$0x1]
        %307 = vst [vmem:[#allocation1] ss:$2 sm:$0xff] %v301
        %v308 = vld.sshfl [vmem:[#allocation1] sm:$0xff pattern:$0x75316420]
        %v309 = vld.sshfl [vmem:[#allocation1 + $0x8] sm:$0xff pattern:$0x75316420]
        %312 = vrot.lane.b32.xlu0 %v308, 17
        %v313 = vpop.permute.xlu0 %312
        %314 = vrot.lane.b32.xlu0 %v309, 17
        %v315 = vpop.permute.xlu0 %314
        %v316 = vlaneseq
        %v317 = vand.u32 %v316, 127
        %vm318 = vcmp.lt.s32.totalorder %v317, 17
        %v319 = vsel %vm318, %v313, %v315
        %v320 = vsel %vm318, %v315, %v313
        %v321 = vperm.slane %v302, 0
        %v322 = vperm.slane %v303, 0
        %v323 = vmul.f32 %v320, %v321
        %v324 = vmul.f32 %v319, %v322
        %325 = vst [vmem:[#allocation1] ss:$2 sm:$0xff] %v301
        %v326 = vld.sshfl [vmem:[#allocation1] sm:$0xff pattern:$0x75316420]
        %v327 = vld.sshfl [vmem:[#allocation1 + $0x8] sm:$0xff pattern:$0x75316420]
        %330 = vrot.lane.b32.xlu0 %v326, 16
        %v331 = vpop.permute.xlu0 %330
        %332 = vrot.lane.b32.xlu0 %v327, 16
        %v333 = vpop.permute.xlu0 %332
        %vm334 = vcmp.lt.s32.totalorder %v317, 16
        %v335 = vsel %vm334, %v331, %v333
        %v336 = vsel %vm334, %v333, %v331
        %v337 = vperm.slane %v302, 1
        %v338 = vperm.slane %v303, 1
        %v339 = vmul.f32 %v336, %v337
        %v340 = vmul.f32 %v335, %v338
        %341 = vst [vmem:[#allocation1] ss:$2 sm:$0xff] %v301
        %v342 = vld.sshfl [vmem:[#allocation1] sm:$0xff pattern:$0x75316420]
        %v343 = vld.sshfl [vmem:[#allocation1 + $0x8] sm:$0xff pattern:$0x75316420]
        %346 = vrot.lane.b32.xlu0 %v342, 15
        %v347 = vpop.permute.xlu0 %346
        %348 = vrot.lane.b32.xlu0 %v343, 15
        %v349 = vpop.permute.xlu0 %348
        %vm350 = vcmp.lt.s32.totalorder %v317, 15
        %v351 = vsel %vm350, %v347, %v349
        %v352 = vsel %vm350, %v349, %v347
        %v353 = vperm.slane %v302, 2
        %v354 = vperm.slane %v303, 2
        %v355 = vmul.f32 %v352, %v353
        %v356 = vmul.f32 %v351, %v354
        %357 = vst [vmem:[#allocation1] ss:$2 sm:$0xff] %v301
        %v358 = vld.sshfl [vmem:[#allocation1] sm:$0xff pattern:$0x75316420]
        %v359 = vld.sshfl [vmem:[#allocation1 + $0x8] sm:$0xff pattern:$0x75316420]
        %362 = vrot.lane.b32.xlu0 %v358, 1
        %v363 = vpop.permute.xlu0 %362
        %364 = vrot.lane.b32.xlu0 %v359, 1
        %v365 = vpop.permute.xlu0 %364
        %vm366 = vcmp.lt.s32.totalorder %v317, 1
        %v367 = vsel %vm366, %v363, %v365
        %v368 = vsel %vm366, %v365, %v363
        %v369 = vperm.slane %v302, 3
        %v370 = vperm.slane %v303, 3
        %v371 = vmul.f32 %v368, %v369
        %v372 = vmul.f32 %v367, %v370
        %v373 = vperm.slane %v302, 4
        %v374 = vperm.slane %v303, 4
        %v377 = vrot.slane %v374, 4
        %vm378 = vcmask 1043456
        %v379 = vsel %vm378, %v373, %v377
        %v381 = vmul.f32 %v301, %v379
        %382 = vst [vmem:[#allocation1] ss:$2 sm:$0xff] %v301
        %v383 = vld.sshfl [vmem:[#allocation1] sm:$0xff pattern:$0x75316420]
        %v384 = vld.sshfl [vmem:[#allocation1 + $0x8] sm:$0xff pattern:$0x75316420]
        %387 = vrot.lane.b32.xlu0 %v383, 127
        %v388 = vpop.permute.xlu0 %387
        %389 = vrot.lane.b32.xlu0 %v384, 127
        %v390 = vpop.permute.xlu0 %389
        %vm391 = vcmp.lt.s32.totalorder %v317, 127
        %v392 = vsel %vm391, %v388, %v390
        %v393 = vsel %vm391, %v390, %v388
        %v394 = vperm.slane %v302, 5
        %v395 = vperm.slane %v303, 5
        %v396 = vmul.f32 %v392, %v394
        %v397 = vmul.f32 %v393, %v395
        %398 = vst [vmem:[#allocation1] ss:$2 sm:$0xff] %v301
        %v399 = vld.sshfl [vmem:[#allocation1] sm:$0xff pattern:$0x75316420]
        %v400 = vld.sshfl [vmem:[#allocation1 + $0x8] sm:$0xff pattern:$0x75316420]
        %403 = vrot.lane.b32.xlu0 %v399, 113
        %v404 = vpop.permute.xlu0 %403
        %405 = vrot.lane.b32.xlu0 %v400, 113
        %v406 = vpop.permute.xlu0 %405
        %vm407 = vcmp.lt.s32.totalorder %v317, 113
        %v408 = vsel %vm407, %v404, %v406
        %v409 = vsel %vm407, %v406, %v404
        %v410 = vperm.slane %v302, 6
        %v411 = vperm.slane %v303, 6
        %v412 = vmul.f32 %v408, %v410
        %v413 = vmul.f32 %v409, %v411
        %414 = vst [vmem:[#allocation1] ss:$2 sm:$0xff] %v301
        %v415 = vld.sshfl [vmem:[#allocation1] sm:$0xff pattern:$0x75316420]
        %v416 = vld.sshfl [vmem:[#allocation1 + $0x8] sm:$0xff pattern:$0x75316420]
        %419 = vrot.lane.b32.xlu0 %v415, 112
        %v420 = vpop.permute.xlu0 %419
        %421 = vrot.lane.b32.xlu0 %v416, 112
        %v422 = vpop.permute.xlu0 %421
        %vm423 = vcmp.lt.s32.totalorder %v317, 112
        %v424 = vsel %vm423, %v420, %v422
        %v425 = vsel %vm423, %v422, %v420
        %v426 = vperm.slane %v302, 7
        %v427 = vperm.slane %v303, 7
        %v428 = vmul.f32 %v424, %v426
        %v429 = vmul.f32 %v425, %v427
        %430 = vst [vmem:[#allocation1] ss:$2 sm:$0xff] %v301
        %v431 = vld.sshfl [vmem:[#allocation1] sm:$0xff pattern:$0x75316420]
        %v432 = vld.sshfl [vmem:[#allocation1 + $0x8] sm:$0xff pattern:$0x75316420]
        %435 = vrot.lane.b32.xlu0 %v431, 111
        %v436 = vpop.permute.xlu0 %435
        %437 = vrot.lane.b32.xlu0 %v432, 111
        %v438 = vpop.permute.xlu0 %437
        %vm439 = vcmp.lt.s32.totalorder %v317, 111
        %v440 = vsel %vm439, %v436, %v438
        %v441 = vsel %vm439, %v438, %v436
        %v442 = vperm.slane %v304, 0
        %v443 = vperm.slane %v305, 0
        %v444 = vmul.f32 %v440, %v442
        %v445 = vmul.f32 %v441, %v443
        %v448 = vrot.slane %v339, 4
        %v449 = vrot.slane %v340, 4
        %v454 = vrot.slane %v371, 4
        %v455 = vrot.slane %v372, 4
        %459 = vst [vmem:[#allocation1] ss:$2 sm:$0xff] %v381
        %v460 = vld.sshfl [vmem:[#allocation1] sm:$0xff pattern:$0x75316420]
        %v461 = vld.sshfl [vmem:[#allocation1 + $0x8] sm:$0xff pattern:$0x75316420]
        %v466 = vrot.slane %v396, 4
        %v467 = vrot.slane %v397, 4
        %v472 = vrot.slane %v428, 4
        %v473 = vrot.slane %v429, 4
        %v476 = vsel %vm378, %v323, %v448
        %v477 = vsel %vm378, %v324, %v449
        %v478 = vsel %vm378, %v355, %v454
        %v479 = vsel %vm378, %v356, %v455
        %v480 = vsel %vm378, %v460, %v466
        %v481 = vsel %vm378, %v461, %v467
        %v482 = vsel %vm378, %v412, %v472
        %v483 = vsel %vm378, %v413, %v473
        %v484 = vld [vmem:[%s2] sm:$0xf]
        %v485 = vld [vmem:[%s3] sm:$0xf]
        %487 = vset.pattern.permute.xlu0 0
        %488 = vperm.xlu0 %487, %v485
        %v489 = vpop.permute.xlu0 %488
        %vm491 = vcmask 293888
        %v493 = vsel %vm491, %v484, 0
        %v496 = vsel %vm378, %v444, 0
        %v499 = vsel %vm378, %v445, 0
        %501 = vmatpush.msra.mxu0 0.0
        %502 = vmatpush.msra.mxu0 0.0
        %503 = vmatpush.msra.mxu0 0.0
        %504 = vmatpush.msra.mxu0 0.0
        %505 = vmatpush.msra.mxu0 0.0
        %506 = vmatpush.msra.mxu0 0.0
        %507 = vmatpush.msra.mxu0 0.0
        %508 = vmatpush.msra.mxu0 0.0
        %509 = vmatpush.msra.mxu0 0.0
        %510 = vmatpush.msra.mxu0 0.0
        %511 = vmatpush.msra.mxu0 0.0
        %512 = vmatpush.msra.mxu0 %v496
        %513 = vmatpush.msra.mxu0 %v482
        %514 = vmatpush.msra.mxu0 %v480
        %515 = vmatpush.msra.mxu0 %v478
        %516 = vmatpush.msra.mxu0 %v476
        %517 = vmatmul.f32.gmra.mxu0 %v493
        %v518 = vpop.f32.mrf.mxu0
        %v519 = vadd.f32 %v489, %v518
        %520 = vdwg.mxu0
        %521 = vmatpush.msra.mxu0 0.0
        %522 = vmatpush.msra.mxu0 0.0
        %523 = vmatpush.msra.mxu0 0.0
        %524 = vmatpush.msra.mxu0 0.0
        %525 = vmatpush.msra.mxu0 0.0
        %526 = vmatpush.msra.mxu0 0.0
        %527 = vmatpush.msra.mxu0 0.0
        %528 = vmatpush.msra.mxu0 0.0
        %529 = vmatpush.msra.mxu0 0.0
        %530 = vmatpush.msra.mxu0 0.0
        %531 = vmatpush.msra.mxu0 0.0
        %532 = vmatpush.msra.mxu0 %v499
        %533 = vmatpush.msra.mxu0 %v483
        %534 = vmatpush.msra.mxu0 %v481
        %535 = vmatpush.msra.mxu0 %v479
        %536 = vmatpush.msra.mxu0 %v477
        %537 = vmatmul.f32.gmra.mxu0 %v493
        %v538 = vpop.f32.mrf.mxu0
        %v539 = vadd.f32 %v489, %v538
        %540 = vdwg.mxu0
        %542 = vst [vmem:[#allocation1] ss:$2 sm:$0xff] %v299
        %v543 = vld.sshfl [vmem:[#allocation1] sm:$0xff pattern:$0x75316420]
        %v544 = vld.sshfl [vmem:[#allocation1 + $0x8] sm:$0xff pattern:$0x75316420]
        %v547 = vadd.f32 %v519, %v543
        %v548 = vadd.f32 %v539, %v544
        %v551 = vrot.slane %v548, 4
        %v552 = vsel %vm378, %v547, %v551
        %554 = vst [vmem:[%s298] sm:$0xff] %v552
        %s555 = sand.u32 %s148, 1
        %s556 = scalar_lea.sflag [#allocation4], %s555
        %s557 = sand.u32 %s148, 1
        %s558 = smul.addr %s557, 8
        %s559 = scalar_lea.vmem [#allocation8], %s558
        // Predicated region
        $region53: #{tpu_custom_call.1} parent=39 // pred_check
          %p560 = pneg %p158
        $region54: #{tpu_custom_call.1} parent=39 // pred_check_branch
          %562 = sbr.rel (%p560) target = $region56
        $region55: #{tpu_custom_call.1} parent=39 // pred_region
          %564 = vsyncadd %s556, 0
          %s565 = smul.addr %s25, 2
          %s566 = smul.addr %s565, 4
          %s567 = scalar_lea.hbm %s5, %s566
          %s569 = sshll.u32 %s559, 4
          %s570 = int_to_ptr.vmem [resolvable:$true] %s569
          %s571 = sshll.u32 %s567, 4
          %s572 = int_to_ptr.hbm [resolvable:$true] %s571
          %574 = dma.vmem_to_hbm [thread:$0]  %s570, 128, %s572, %s556
        $region56: #{tpu_custom_call.1} parent=39 // pred_fallthru
          _
      $region40: #{tpu_custom_call.1} parent=5 // pred_fallthru
        _
      %p575 = scmp.le.s32.totalorder 2, %s20
      // Predicated region
      $region57: #{tpu_custom_call.1} parent=5 // pred_check
        %p576 = pneg %p575
      $region58: #{tpu_custom_call.1} parent=5 // pred_check_branch
        %578 = sbr.rel (%p576) target = $region60
      $region59: #{tpu_custom_call.1} parent=5 // pred_region
        %s579 = ssub.s32 %s20, 2
        // Predicated region
        $region61: #{tpu_custom_call.1} parent=59 // pred_check
          %p580 = pneg %p164
        $region62: #{tpu_custom_call.1} parent=59 // pred_check_branch
          %582 = sbr.rel (%p580) target = $region64
        $region63: #{tpu_custom_call.1} parent=59 // pred_region
          %s583 = sand.u32 %s149, 1
          %s584 = scalar_lea.sflag [#allocation4], %s583
          %s585 = sand.u32 %s149, 1
          %s586 = smul.addr %s585, 8
          %s587 = scalar_lea.vmem [#allocation8], %s586
          %589 = dma.done %s584, 128
        $region64: #{tpu_custom_call.1} parent=59 // pred_fallthru
          _
      $region60: #{tpu_custom_call.1} parent=5 // pred_fallthru
        _
    $region6: #{tpu_custom_call.1} parent=1 // loop_footer
      %s24 = sadd.s32 1, %s20
    $region7: #{tpu_custom_call.1} parent=1 // loop_footer_branch
      %19 = sbr.rel target = $region3
    $region8: #{tpu_custom_call.1} parent=1 // loop_exit
      _
    %590 = vsyncpa [#allocation3], 1
    %s591 = scalar_lea.sflag [#allocation3], 1
    %592 = vsyncpa %s591, 1
    %593 = vsyncpa [#allocation6], 1
    %s594 = scalar_lea.sflag [#allocation6], 1
    %595 = vsyncpa %s594, 1
    %596 = vsyncpa [#allocation4], 1
    %s597 = scalar_lea.sflag [#allocation4], 1
    %598 = vsyncpa %s597, 1

</llo_original>
